<compile_context>
chip_gen: v5e
topology: v5e:2x2
jax: 0.10.0
libtpu: 0.0.40
codegen_flags: <defaults>
</compile_context>

<pallas_src>
import functools

import jax
import jax.numpy as jnp
from jax.experimental import pallas as pl
from jax.experimental.pallas import tpu as pltpu


def _two_convs(xcol, w1_ref, b1_ref, w2_ref, b2_ref, seq_len):
    """conv1(k=3, fused taps) -> relu -> conv2(k=3, roll-based taps). f32 out."""
    m = xcol.shape[0]                                        # rows = Bn * L

    # conv_block1: single matmul, K = 3*C_in (im2col done in the wrapper).
    h = jnp.dot(xcol, w1_ref[...], preferred_element_type=jnp.float32)
    h = jnp.maximum(h + b1_ref[...].astype(jnp.float32), 0.0)   # (m, C_out) f32

    # conv_block2: h2[l] = h[l-1]@w2[0] + h[l]@w2[1] + h[l+1]@w2[2] + b2.
    # Shift h with XLU rolls; zero the rows that would cross a sample boundary
    # (or wrap around the block edge).
    row = jax.lax.broadcasted_iota(jnp.int32, h.shape, 0)
    pos = row % seq_len                                      # position inside a sample
    h_prev = jnp.where(pos == 0, 0.0, pltpu.roll(h, shift=1, axis=0))
    h_next = jnp.where(pos == seq_len - 1, 0.0, pltpu.roll(h, shift=m - 1, axis=0))

    h2 = jnp.dot(h_prev, w2_ref[0], preferred_element_type=jnp.float32)
    h2 = h2 + jnp.dot(h, w2_ref[1], preferred_element_type=jnp.float32)
    h2 = h2 + jnp.dot(h_next, w2_ref[2], preferred_element_type=jnp.float32)
    return h2 + b2_ref[...].astype(jnp.float32)

    # TODO(synk): Dropout(0.2) is identity in eval mode; training-mode stochastic
    # dropout (prng + mask + 1/(1-p) scale) is not implemented here.


def _block_unit_kernel_proj(xcol_ref, w1_ref, b1_ref, w2_ref, b2_ref,
                            wres_ref, bres_ref, out_ref, *, seq_len):
    """c_in != c_out: residual = x @ wa + ba, folded into the im2col operand."""
    xcol = xcol_ref[...]                                     # (rows, 3*C_in)
    h2 = _two_convs(xcol, w1_ref, b1_ref, w2_ref, b2_ref, seq_len)
    res = jnp.dot(xcol, wres_ref[...], preferred_element_type=jnp.float32)
    res = res + bres_ref[...].astype(jnp.float32)
    out_ref[...] = (h2 + res).astype(out_ref.dtype)


def _block_unit_kernel_ident(xcol_ref, xres_ref, w1_ref, b1_ref, w2_ref, b2_ref,
                             out_ref, *, seq_len):
    """c_in == c_out: residual is the raw input (no 1x1 matmul)."""
    xcol = xcol_ref[...]
    h2 = _two_convs(xcol, w1_ref, b1_ref, w2_ref, b2_ref, seq_len)
    out_ref[...] = (h2 + xres_ref[...].astype(jnp.float32)).astype(out_ref.dtype)


def _choose_batch(n, seq_len):
    """Samples per grid step: fill the MXU M axis, keep blocks (8,*)-aligned."""
    target_rows = 256
    for bn in range(1, n + 1):
        if n % bn:
            continue
        rows = bn * seq_len
        if rows % 8 != 0 and bn != n:
            continue
        if rows >= target_rows or bn == n:
            return bn
    return n
    # TODO(synk): for very long L (v7x 64 MiB VMEM) an L-tiling grid axis with a
    # 2-row halo would be needed; not required at these shapes.


def block_unit_forward(x_ncl, params):
    """x_ncl: (N, C_in, L) -- PyTorch Conv1d layout. Returns (N, C_out, L)."""
    w1, b1, w2, b2, wa, ba = params
    n, c_in, seq_len = x_ncl.shape
    c_out = w1.shape[-1]
    dt = x_ncl.dtype

    # Channels-last + im2col: x_col[n, l, k*C_in + c] = x_pad[n, l + k, c].
    x_nlc = jnp.transpose(x_ncl, (0, 2, 1))                  # (N, L, C_in)
    x_pad = jnp.pad(x_nlc, ((0, 0), (1, 1), (0, 0)))         # (N, L+2, C_in)
    x_col = jnp.concatenate([x_pad[:, k:k + seq_len, :] for k in range(3)],
                            axis=-1).reshape(n * seq_len, 3 * c_in)

    w1_flat = jnp.reshape(w1, (3 * c_in, c_out))             # rows ordered (k, c)

    bn = _choose_batch(n, seq_len)
    rows = bn * seq_len
    grid = (n // bn,)

    weight_specs = [
        pl.BlockSpec((3 * c_in, c_out), lambda i: (0, 0)),     # w1_flat
        pl.BlockSpec((1, c_out), lambda i: (0, 0)),            # b1
        pl.BlockSpec((3, c_out, c_out), lambda i: (0, 0, 0)),  # w2
        pl.BlockSpec((1, c_out), lambda i: (0, 0)),            # b2
    ]
    xcol_spec = pl.BlockSpec((rows, 3 * c_in), lambda i: (i, 0))

    if c_in != c_out:
        # Fold the 1x1 residual conv into the im2col operand: the center tap
        # columns of x_col are exactly x, so a zero-padded weight reproduces x@wa.
        wres = jnp.zeros((3 * c_in, c_out), w1.dtype).at[c_in:2 * c_in, :].set(wa)
        kernel = functools.partial(_block_unit_kernel_proj, seq_len=seq_len)
        in_specs = [xcol_spec] + weight_specs + [
            pl.BlockSpec((3 * c_in, c_out), lambda i: (0, 0)),  # wres
            pl.BlockSpec((1, c_out), lambda i: (0, 0)),         # ba
        ]
        args = (x_col, w1_flat, b1, w2, b2, wres, ba)
    else:
        x_res = x_nlc.reshape(n * seq_len, c_in)
        kernel = functools.partial(_block_unit_kernel_ident, seq_len=seq_len)
        in_specs = [xcol_spec,
                    pl.BlockSpec((rows, c_out), lambda i: (i, 0))] + weight_specs
        args = (x_col, x_res, w1_flat, b1, w2, b2)

    out_flat = pl.pallas_call(
        kernel,
        out_shape=jax.ShapeDtypeStruct((n * seq_len, c_out), dt),
        grid_spec=pltpu.PrefetchScalarGridSpec(
            num_scalar_prefetch=0,
            grid=grid,
            in_specs=in_specs,
            out_specs=pl.BlockSpec((rows, c_out), lambda i: (i, 0)),
        ),
        compiler_params=pltpu.CompilerParams(dimension_semantics=("parallel",)),
    )(*args)

    out = out_flat.reshape(n, seq_len, c_out)
    return jnp.transpose(out, (0, 2, 1))                     # (N, C_out, L)


def ref_forward(x_ncl, params):
    """Pure-JAX reference of Block_Unit.forward (eval mode)."""
    w1, b1, w2, b2, wa, ba = params
    x = jnp.transpose(x_ncl, (0, 2, 1))                      # (N, L, C_in)
    seq_len = x.shape[1]

    def conv3(v, w, b):
        vp = jnp.pad(v, ((0, 0), (1, 1), (0, 0)))
        acc = sum(jnp.einsum('nlc,cd->nld', vp[:, k:k + seq_len, :], w[k])
                  for k in range(3))
        return acc + b

    h = jax.nn.relu(conv3(x, w1, b1))
    h2 = conv3(h, w2, b2)
    if x.shape[-1] != w1.shape[-1]:
        xa = jnp.einsum('nlc,cd->nld', x, wa) + ba
    else:
        xa = x
    return jnp.transpose(h2 + xa, (0, 2, 1))


def _make_params(key, c_in, c_out):
    ks = jax.random.split(key, 6)
    w1 = 0.01 * jax.random.normal(ks[0], (3, c_in, c_out), jnp.float32)
    b1 = 0.01 * jax.random.normal(ks[1], (1, c_out), jnp.float32)
    w2 = 0.01 * jax.random.normal(ks[2], (3, c_out, c_out), jnp.float32)
    b2 = 0.01 * jax.random.normal(ks[3], (1, c_out), jnp.float32)
    wa = 0.01 * jax.random.normal(ks[4], (c_in, c_out), jnp.float32)
    ba = 0.01 * jax.random.normal(ks[5], (1, c_out), jnp.float32)
    return (w1, b1, w2, b2, wa, ba)


if __name__ == "__main__":
    key = jax.random.PRNGKey(0)
    k1, k2, k3, k4 = jax.random.split(key, 4)

    # Case 1: c_in != c_out (projection residual path).
    N, C_IN, C_OUT, L = 2, 4, 8, 16
    params = _make_params(k1, C_IN, C_OUT)
    x = jax.random.normal(k2, (N, C_IN, L), jnp.float32)     # PyTorch (N, C, L)
    out = block_unit_forward(x, params)
    jax.block_until_ready(out)
    ref = ref_forward(x, params)
    assert out.shape == (N, C_OUT, L)
    assert jnp.allclose(out, ref, atol=1e-5, rtol=1e-5), "mismatch (proj case)"

    # Case 2: c_in == c_out (identity residual path, adjust_dim skipped).
    params2 = _make_params(k3, C_OUT, C_OUT)
    x2 = jax.random.normal(k4, (N, C_OUT, L), jnp.float32)
    out2 = block_unit_forward(x2, params2)
    jax.block_until_ready(out2)
    ref2 = ref_forward(x2, params2)
    assert out2.shape == (N, C_OUT, L)
    assert jnp.allclose(out2, ref2, atol=1e-5, rtol=1e-5), "mismatch (identity case)"

    print("KERNEL_OK")
</pallas_src>

<mosaic_0001>
module attributes {stable_mosaic.version = 11 : i64} {
  func.func @_block_unit_kernel_proj(%arg0: i32, %arg1: memref<32x12xf32, #tpu.memory_space<vmem>>, %arg2: memref<12x8xf32, #tpu.memory_space<vmem>>, %arg3: memref<1x8xf32, #tpu.memory_space<vmem>>, %arg4: memref<3x8x8xf32, #tpu.memory_space<vmem>>, %arg5: memref<1x8xf32, #tpu.memory_space<vmem>>, %arg6: memref<12x8xf32, #tpu.memory_space<vmem>>, %arg7: memref<1x8xf32, #tpu.memory_space<vmem>>, %arg8: memref<32x8xf32, #tpu.memory_space<vmem>>) attributes {dimension_semantics = [#tpu.dimension_semantics<parallel>], iteration_bounds = array<i64: 1>, scalar_prefetch = 0 : i64, scratch_operands = 0 : i64, tpu.core_type = #tpu.core_type<tc>, window_params = [{transform_indices = @transform_0, window_bounds = array<i64: 32, 12>}, {pipeline_mode = #tpu.pipeline_mode<synchronous>, transform_indices = @transform_1, window_bounds = array<i64: 12, 8>}, {pipeline_mode = #tpu.pipeline_mode<synchronous>, transform_indices = @transform_2, window_bounds = array<i64: 1, 8>}, {pipeline_mode = #tpu.pipeline_mode<synchronous>, transform_indices = @transform_3, window_bounds = array<i64: 3, 8, 8>}, {pipeline_mode = #tpu.pipeline_mode<synchronous>, transform_indices = @transform_4, window_bounds = array<i64: 1, 8>}, {pipeline_mode = #tpu.pipeline_mode<synchronous>, transform_indices = @transform_5, window_bounds = array<i64: 12, 8>}, {pipeline_mode = #tpu.pipeline_mode<synchronous>, transform_indices = @transform_6, window_bounds = array<i64: 1, 8>}, {transform_indices = @transform_7, window_bounds = array<i64: 32, 8>}]} {
    %c0 = arith.constant 0 : index
    %c0_0 = arith.constant 0 : index
    %0 = vector.load %arg1[%c0, %c0_0] : memref<32x12xf32, #tpu.memory_space<vmem>>, vector<32x12xf32>
    %c0_1 = arith.constant 0 : index
    %c0_2 = arith.constant 0 : index
    %1 = vector.load %arg2[%c0_1, %c0_2] : memref<12x8xf32, #tpu.memory_space<vmem>>, vector<12x8xf32>
    %cst = arith.constant dense<0.000000e+00> : vector<32x8xf32>
    %2 = tpu.matmul %0, %1, %cst {dimension_numbers = #tpu.dot_dimension_numbers<[1], [0], [0], [1], [0, 0, 1, 1], [], []>} : vector<32x12xf32>, vector<12x8xf32>, vector<32x8xf32> -> vector<32x8xf32>
    %c0_3 = arith.constant 0 : index
    %c0_4 = arith.constant 0 : index
    %3 = vector.load %arg3[%c0_3, %c0_4] : memref<1x8xf32, #tpu.memory_space<vmem>>, vector<1x8xf32>
    %4 = vector.broadcast %3 : vector<1x8xf32> to vector<32x8xf32>
    %5 = arith.addf %2, %4 : vector<32x8xf32>
    %cst_5 = arith.constant 0.000000e+00 : f32
    %6 = vector.broadcast %cst_5 : f32 to vector<32x8xf32>
    %7 = arith.maximumf %5, %6 : vector<32x8xf32>
    %8 = tpu.iota {dimensions = array<i32: 0>} : vector<32x8xi32>
    %c16_i32 = arith.constant 16 : i32
    %c0_i32 = arith.constant 0 : i32
    %9 = arith.cmpi eq, %c16_i32, %c0_i32 : i32
    %c1_i32 = arith.constant 1 : i32
    %10 = arith.select %9, %c1_i32, %c16_i32 : i32
    %11 = vector.broadcast %10 : i32 to vector<32x8xi32>
    %12 = arith.remsi %8, %11 : vector<32x8xi32>
    %c0_i32_6 = arith.constant 0 : i32
    %13 = vector.broadcast %c0_i32_6 : i32 to vector<32x8xi32>
    %14 = arith.cmpi ne, %12, %13 : vector<32x8xi32>
    %c0_i32_7 = arith.constant 0 : i32
    %15 = vector.broadcast %c0_i32_7 : i32 to vector<32x8xi32>
    %16 = arith.cmpi slt, %12, %15 : vector<32x8xi32>
    %c0_i32_8 = arith.constant 0 : i32
    %17 = arith.cmpi slt, %10, %c0_i32_8 : i32
    %18 = vector.broadcast %17 : i1 to vector<32x8xi1>
    %19 = vector.broadcast %18 : vector<32x8xi1> to vector<32x8xi1>
    %20 = arith.xori %16, %19 : vector<32x8xi1>
    %21 = arith.andi %20, %14 : vector<32x8xi1>
    %22 = vector.broadcast %10 : i32 to vector<32x8xi32>
    %23 = arith.addi %12, %22 : vector<32x8xi32>
    %24 = arith.select %21, %23, %12 : vector<32x8xi1>, vector<32x8xi32>
    %c0_i32_9 = arith.constant 0 : i32
    %25 = vector.broadcast %c0_i32_9 : i32 to vector<32x8xi32>
    %26 = arith.cmpi eq, %24, %25 : vector<32x8xi32>
    %c1_i32_10 = arith.constant 1 : i32
    %27 = tpu.dynamic_rotate %7 by %c1_i32_10 dim 0 : vector<32x8xf32>, i32 -> vector<32x8xf32>
    %cst_11 = arith.constant 0.000000e+00 : f32
    %28 = vector.broadcast %cst_11 : f32 to vector<32x8xf32>
    %29 = arith.select %26, %28, %27 : vector<32x8xi1>, vector<32x8xf32>
    %c15_i32 = arith.constant 15 : i32
    %30 = vector.broadcast %c15_i32 : i32 to vector<32x8xi32>
    %31 = arith.cmpi eq, %24, %30 : vector<32x8xi32>
    %c31_i32 = arith.constant 31 : i32
    %32 = tpu.dynamic_rotate %7 by %c31_i32 dim 0 : vector<32x8xf32>, i32 -> vector<32x8xf32>
    %cst_12 = arith.constant 0.000000e+00 : f32
    %33 = vector.broadcast %cst_12 : f32 to vector<32x8xf32>
    %34 = arith.select %31, %33, %32 : vector<32x8xi1>, vector<32x8xf32>
    %c0_13 = arith.constant 0 : index
    %c0_14 = arith.constant 0 : index
    %c0_15 = arith.constant 0 : index
    %35 = vector.load %arg4[%c0_13, %c0_14, %c0_15] : memref<3x8x8xf32, #tpu.memory_space<vmem>>, vector<1x8x8xf32>
    %36 = vector.shape_cast %35 : vector<1x8x8xf32> to vector<8x8xf32>
    %cst_16 = arith.constant dense<0.000000e+00> : vector<32x8xf32>
    %37 = tpu.matmul %29, %36, %cst_16 {dimension_numbers = #tpu.dot_dimension_numbers<[1], [0], [0], [1], [0, 0, 1, 1], [], []>} : vector<32x8xf32>, vector<8x8xf32>, vector<32x8xf32> -> vector<32x8xf32>
    %c1 = arith.constant 1 : index
    %c0_17 = arith.constant 0 : index
    %c0_18 = arith.constant 0 : index
    %38 = vector.load %arg4[%c1, %c0_17, %c0_18] : memref<3x8x8xf32, #tpu.memory_space<vmem>>, vector<1x8x8xf32>
    %39 = vector.shape_cast %38 : vector<1x8x8xf32> to vector<8x8xf32>
    %cst_19 = arith.constant dense<0.000000e+00> : vector<32x8xf32>
    %40 = tpu.matmul %7, %39, %cst_19 {dimension_numbers = #tpu.dot_dimension_numbers<[1], [0], [0], [1], [0, 0, 1, 1], [], []>} : vector<32x8xf32>, vector<8x8xf32>, vector<32x8xf32> -> vector<32x8xf32>
    %41 = arith.addf %37, %40 : vector<32x8xf32>
    %c2 = arith.constant 2 : index
    %c0_20 = arith.constant 0 : index
    %c0_21 = arith.constant 0 : index
    %42 = vector.load %arg4[%c2, %c0_20, %c0_21] : memref<3x8x8xf32, #tpu.memory_space<vmem>>, vector<1x8x8xf32>
    %43 = vector.shape_cast %42 : vector<1x8x8xf32> to vector<8x8xf32>
    %cst_22 = arith.constant dense<0.000000e+00> : vector<32x8xf32>
    %44 = tpu.matmul %34, %43, %cst_22 {dimension_numbers = #tpu.dot_dimension_numbers<[1], [0], [0], [1], [0, 0, 1, 1], [], []>} : vector<32x8xf32>, vector<8x8xf32>, vector<32x8xf32> -> vector<32x8xf32>
    %45 = arith.addf %41, %44 : vector<32x8xf32>
    %c0_23 = arith.constant 0 : index
    %c0_24 = arith.constant 0 : index
    %46 = vector.load %arg5[%c0_23, %c0_24] : memref<1x8xf32, #tpu.memory_space<vmem>>, vector<1x8xf32>
    %47 = vector.broadcast %46 : vector<1x8xf32> to vector<32x8xf32>
    %48 = arith.addf %45, %47 : vector<32x8xf32>
    %c0_25 = arith.constant 0 : index
    %c0_26 = arith.constant 0 : index
    %49 = vector.load %arg6[%c0_25, %c0_26] : memref<12x8xf32, #tpu.memory_space<vmem>>, vector<12x8xf32>
    %cst_27 = arith.constant dense<0.000000e+00> : vector<32x8xf32>
    %50 = tpu.matmul %0, %49, %cst_27 {dimension_numbers = #tpu.dot_dimension_numbers<[1], [0], [0], [1], [0, 0, 1, 1], [], []>} : vector<32x12xf32>, vector<12x8xf32>, vector<32x8xf32> -> vector<32x8xf32>
    %c0_28 = arith.constant 0 : index
    %c0_29 = arith.constant 0 : index
    %51 = vector.load %arg7[%c0_28, %c0_29] : memref<1x8xf32, #tpu.memory_space<vmem>>, vector<1x8xf32>
    %52 = vector.broadcast %51 : vector<1x8xf32> to vector<32x8xf32>
    %53 = arith.addf %50, %52 : vector<32x8xf32>
    %54 = arith.addf %48, %53 : vector<32x8xf32>
    %c0_30 = arith.constant 0 : index
    %c0_31 = arith.constant 0 : index
    %55 = vector.load %arg8[%c0_30, %c0_31] : memref<32x8xf32, #tpu.memory_space<vmem>>, vector<32x8xf32>
    tpu.vector_store %arg8[%c0_30, %c0_31], %54 {strides = array<i32>} : memref<32x8xf32, #tpu.memory_space<vmem>>, vector<32x8xf32>,
    return
  }
  func.func @transform_0(%arg0: i32) -> (i32, i32) {
    %c0_i32 = arith.constant 0 : i32
    %c0_i32_0 = arith.constant 0 : i32
    return %arg0, %c0_i32 : i32, i32
  }
  func.func @transform_1(%arg0: i32) -> (i32, i32) {
    %c0_i32 = arith.constant 0 : i32
    %c0_i32_0 = arith.constant 0 : i32
    %c0_i32_1 = arith.constant 0 : i32
    return %c0_i32, %c0_i32_0 : i32, i32
  }
  func.func @transform_2(%arg0: i32) -> (i32, i32) {
    %c0_i32 = arith.constant 0 : i32
    %c0_i32_0 = arith.constant 0 : i32
    %c0_i32_1 = arith.constant 0 : i32
    return %c0_i32, %c0_i32_0 : i32, i32
  }
  func.func @transform_3(%arg0: i32) -> (i32, i32, i32) {
    %c0_i32 = arith.constant 0 : i32
    %c0_i32_0 = arith.constant 0 : i32
    %c0_i32_1 = arith.constant 0 : i32
    %c0_i32_2 = arith.constant 0 : i32
    return %c0_i32, %c0_i32_0, %c0_i32_1 : i32, i32, i32
  }
  func.func @transform_4(%arg0: i32) -> (i32, i32) {
    %c0_i32 = arith.constant 0 : i32
    %c0_i32_0 = arith.constant 0 : i32
    %c0_i32_1 = arith.constant 0 : i32
    return %c0_i32, %c0_i32_0 : i32, i32
  }
  func.func @transform_5(%arg0: i32) -> (i32, i32) {
    %c0_i32 = arith.constant 0 : i32
    %c0_i32_0 = arith.constant 0 : i32
    %c0_i32_1 = arith.constant 0 : i32
    return %c0_i32, %c0_i32_0 : i32, i32
  }
  func.func @transform_6(%arg0: i32) -> (i32, i32) {
    %c0_i32 = arith.constant 0 : i32
    %c0_i32_0 = arith.constant 0 : i32
    %c0_i32_1 = arith.constant 0 : i32
    return %c0_i32, %c0_i32_0 : i32, i32
  }
  func.func @transform_7(%arg0: i32) -> (i32, i32) {
    %c0_i32 = arith.constant 0 : i32
    %c0_i32_0 = arith.constant 0 : i32
    return %arg0, %c0_i32 : i32, i32
  }
}

</mosaic_0001>

<llo_original>
// kernel: tpu_custom_call.1
$region0: #{tpu_custom_call.1}
  #allocation0 [shape = 'u32[]', space=smem, size = 0x4, offset = 0x4, fixed_abs, tag = 'smem constant byte address 0x4 - core index']
  #allocation1 [shape = 'u32[72,128]{1,0:T(1,128)}', space=vmem, size = 0x9000, scoped, tag = 'internal scratch']
  %s0 = inlined_call_operand.vmem [shape: f32[32,12], index: 0, kind: input, shape index: {}]
  %s1 = inlined_call_operand.vmem [shape: f32[12,8], index: 1, kind: input, shape index: {}]
  %s2 = inlined_call_operand.vmem [shape: f32[1,8], index: 2, kind: input, shape index: {}]
  %s3 = inlined_call_operand.vmem [shape: f32[3,8,8], index: 3, kind: input, shape index: {}]
  %s4 = inlined_call_operand.vmem [shape: f32[1,8], index: 4, kind: input, shape index: {}]
  %s5 = inlined_call_operand.vmem [shape: f32[12,8], index: 5, kind: input, shape index: {}]
  %s6 = inlined_call_operand.vmem [shape: f32[1,8], index: 6, kind: input, shape index: {}]
  %s7 = inlined_call_operand.vmem [shape: f32[32,8], index: 7, kind: output, shape index: {}]
  %s8 = sld [smem:[#allocation0]]
  $region38: #{tpu_custom_call.1} parent=0
    _
  %s10 = ssub.s32 1, %s8
  %s11 = scalar_select 0, %s10, %s8
  // Predicated region
  $region2: #{tpu_custom_call.1} parent=0 // pred_check
    _
  $region3: #{tpu_custom_call.1} parent=0 // pred_check_branch
    %13 = sbr.rel (0) target = $region5
  $region4: #{tpu_custom_call.1} parent=0 // pred_region
    _
  $region5: #{tpu_custom_call.1} parent=0 // pred_fallthru
    _
  // Predicated region
  $region6: #{tpu_custom_call.1} parent=0 // pred_check
    _
  $region7: #{tpu_custom_call.1} parent=0 // pred_check_branch
    %15 = sbr.rel (0) target = $region9
  $region8: #{tpu_custom_call.1} parent=0 // pred_region
    _
  $region9: #{tpu_custom_call.1} parent=0 // pred_fallthru
    _
  // Predicated region
  $region10: #{tpu_custom_call.1} parent=0 // pred_check
    _
  $region11: #{tpu_custom_call.1} parent=0 // pred_check_branch
    %17 = sbr.rel (0) target = $region13
  $region12: #{tpu_custom_call.1} parent=0 // pred_region
    _
  $region13: #{tpu_custom_call.1} parent=0 // pred_fallthru
    _
  // Predicated region
  $region14: #{tpu_custom_call.1} parent=0 // pred_check
    _
  $region15: #{tpu_custom_call.1} parent=0 // pred_check_branch
    %19 = sbr.rel (0) target = $region17
  $region16: #{tpu_custom_call.1} parent=0 // pred_region
    _
  $region17: #{tpu_custom_call.1} parent=0 // pred_fallthru
    _
  // Predicated region
  $region18: #{tpu_custom_call.1} parent=0 // pred_check
    _
  $region19: #{tpu_custom_call.1} parent=0 // pred_check_branch
    %21 = sbr.rel (0) target = $region21
  $region20: #{tpu_custom_call.1} parent=0 // pred_region
    _
  $region21: #{tpu_custom_call.1} parent=0 // pred_fallthru
    _
  // Predicated region
  $region22: #{tpu_custom_call.1} parent=0 // pred_check
    _
  $region23: #{tpu_custom_call.1} parent=0 // pred_check_branch
    %23 = sbr.rel (0) target = $region25
  $region24: #{tpu_custom_call.1} parent=0 // pred_region
    _
  $region25: #{tpu_custom_call.1} parent=0 // pred_fallthru
    _
  // Predicated region
  $region26: #{tpu_custom_call.1} parent=0 // pred_check
    _
  $region27: #{tpu_custom_call.1} parent=0 // pred_check_branch
    %25 = sbr.rel (0) target = $region29
  $region28: #{tpu_custom_call.1} parent=0 // pred_region
    _
  $region29: #{tpu_custom_call.1} parent=0 // pred_fallthru
    _
  %v26 = vld [vmem:[%s0] sm:$0xff]
  %v27 = vld [vmem:[%s0 + $0x8] sm:$0xff]
  %v28 = vld [vmem:[%s0 + $0x10] sm:$0xff]
  %v29 = vld [vmem:[%s0 + $0x18] sm:$0xff]
  %v30 = vld [vmem:[%s1] sm:$0xff]
  %v31 = vld [vmem:[%s1 + $0x8] sm:$0xf]
  %v32 = vld [vmem:[%s2] sm:$0x1]
  %v34 = vperm.slane %v32, 0
  %vm36 = vcmask 97280
  %v38 = vsel %vm36, %v26, 0
  %v41 = vsel %vm36, %v27, 0
  %v44 = vsel %vm36, %v28, 0
  %v47 = vsel %vm36, %v29, 0
  %vm49 = vcmask 1043456
  %v51 = vsel %vm49, %v31, 0
  %53 = vmatpush.msra.mxu0 0.0
  %54 = vmatpush.msra.mxu0 0.0
  %55 = vmatpush.msra.mxu0 0.0
  %56 = vmatpush.msra.mxu0 0.0
  %57 = vmatpush.msra.mxu0 0.0
  %58 = vmatpush.msra.mxu0 0.0
  %59 = vmatpush.msra.mxu0 0.0
  %60 = vmatpush.msra.mxu0 0.0
  %61 = vmatpush.msra.mxu0 0.0
  %62 = vmatpush.msra.mxu0 0.0
  %63 = vmatpush.msra.mxu0 0.0
  %64 = vmatpush.msra.mxu0 0.0
  %65 = vmatpush.msra.mxu0 0.0
  %66 = vmatpush.msra.mxu0 0.0
  %67 = vmatpush.msra.mxu0 %v51
  %68 = vmatpush.msra.mxu0 %v30
  %69 = vmatmul.f32.gmra.mxu0 %v38
  %v70 = vpop.f32.mrf.mxu0
  %v71 = vadd.f32 %v34, %v70
  %72 = vmatmul.f32.gmra.mxu0 %v41
  %v73 = vpop.f32.mrf.mxu0
  %v74 = vadd.f32 %v34, %v73
  %75 = vmatmul.f32.gmra.mxu0 %v44
  %v76 = vpop.f32.mrf.mxu0
  %v77 = vadd.f32 %v34, %v76
  %78 = vmatmul.f32.gmra.mxu0 %v47
  %v79 = vpop.f32.mrf.mxu0
  %v80 = vadd.f32 %v34, %v79
  %81 = vdwg.mxu0
  %v82 = vmax.f32 %v71, 0.0
  %v83 = vmax.f32 %v74, 0.0
  %v84 = vmax.f32 %v77, 0.0
  %v85 = vmax.f32 %v80, 0.0
  %v86 = vlaneseq
  %v87 = vshrl.u32 %v86, 7
  %v88 = vadd.s32 %v87, 8
  %v89 = vadd.s32 %v87, 16
  %v90 = vadd.s32 %v87, 24
  %vm91 = vcmp.lt.s32.totalorder %v87, 0
  %v92 = vsub.s32 0, %v87
  %v93 = vsel %vm91, %v92, %v87
  %v94 = vshrl.u32 %v93, 4
  %v95 = vand.u32 %v93, 15
  %v96 = vsub.s32 0, %v95
  %v97 = vsel %vm91, %v96, %v95
  %vm98 = vcmp.lt.s32.totalorder %v88, 0
  %v99 = vsub.s32 0, %v88
  %v100 = vsel %vm98, %v99, %v88
  %v101 = vshrl.u32 %v100, 4
  %v102 = vand.u32 %v100, 15
  %v103 = vsub.s32 0, %v102
  %v104 = vsel %vm98, %v103, %v102
  %vm105 = vcmp.lt.s32.totalorder %v89, 0
  %v106 = vsub.s32 0, %v89
  %v107 = vsel %vm105, %v106, %v89
  %v108 = vshrl.u32 %v107, 4
  %v109 = vand.u32 %v107, 15
  %v110 = vsub.s32 0, %v109
  %v111 = vsel %vm105, %v110, %v109
  %vm112 = vcmp.lt.s32.totalorder %v90, 0
  %v113 = vsub.s32 0, %v90
  %v114 = vsel %vm112, %v113, %v90
  %v115 = vshrl.u32 %v114, 4
  %v116 = vand.u32 %v114, 15
  %v117 = vsub.s32 0, %v116
  %v118 = vsel %vm112, %v117, %v116
  %vm119 = vcmp.ne.s32.totalorder %v97, 0
  %vm120 = vcmp.ne.s32.totalorder %v104, 0
  %vm121 = vcmp.ne.s32.totalorder %v111, 0
  %vm122 = vcmp.ne.s32.totalorder %v118, 0
  %vm123 = vcmp.lt.s32.totalorder %v97, 0
  %vm124 = vcmp.lt.s32.totalorder %v104, 0
  %vm125 = vcmp.lt.s32.totalorder %v111, 0
  %vm126 = vcmp.lt.s32.totalorder %v118, 0
  %vm127 = vmand %vm123, %vm119
  %vm128 = vmand %vm124, %vm120
  %vm129 = vmand %vm125, %vm121
  %vm130 = vmand %vm126, %vm122
  %v131 = vadd.s32 %v97, 16
  %v132 = vadd.s32 %v104, 16
  %v133 = vadd.s32 %v111, 16
  %v134 = vadd.s32 %v118, 16
  %v135 = vsel %vm127, %v131, %v97
  %v136 = vsel %vm128, %v132, %v104
  %v137 = vsel %vm129, %v133, %v111
  %v138 = vsel %vm130, %v134, %v118
  %vm139 = vcmp.eq.s32.totalorder %v135, 0
  %vm140 = vcmp.eq.s32.totalorder %v136, 0
  %vm141 = vcmp.eq.s32.totalorder %v137, 0
  %vm142 = vcmp.eq.s32.totalorder %v138, 0
  %v143 = vrot.slane %v82, 7
  %v144 = vrot.slane %v83, 7
  %v145 = vrot.slane %v84, 7
  %v146 = vrot.slane %v85, 7
  %vm147 = vcmp.lt.s32.totalorder %v87, 1
  %v148 = vsel %vm147, %v145, %v146
  %v149 = vsel %vm147, %v144, %v145
  %v150 = vsel %vm147, %v143, %v144
  %v151 = vsel %vm147, %v146, %v143
  %v152 = vsel %vm139, 0.0, %v151
  %v153 = vsel %vm140, 0.0, %v150
  %v154 = vsel %vm141, 0.0, %v149
  %v155 = vsel %vm142, 0.0, %v148
  %vm156 = vcmp.eq.s32.totalorder %v135, 15
  %vm157 = vcmp.eq.s32.totalorder %v136, 15
  %vm158 = vcmp.eq.s32.totalorder %v137, 15
  %vm159 = vcmp.eq.s32.totalorder %v138, 15
  %v160 = vrot.slane %v82, 1
  %v161 = vrot.slane %v83, 1
  %v162 = vrot.slane %v84, 1
  %v163 = vrot.slane %v85, 1
  %vm164 = vcmp.lt.s32.totalorder %v87, 7
  %v165 = vsel %vm164, %v162, %v163
  %v166 = vsel %vm164, %v161, %v162
  %v167 = vsel %vm164, %v160, %v161
  %v168 = vsel %vm164, %v163, %v160
  %v169 = vsel %vm156, 0.0, %v167
  %v170 = vsel %vm157, 0.0, %v166
  %v171 = vsel %vm158, 0.0, %v165
  %v172 = vsel %vm159, 0.0, %v168
  %v173 = vld [vmem:[%s3] sm:$0xff]
  %s174 = scalar_lea.vmem %s3, 8
  %v175 = vld [vmem:[%s174] sm:$0xff]
  %vm176 = vcmask 64512
  %v178 = vsel %vm176, %v82, 0
  %v181 = vsel %vm176, %v83, 0
  %v184 = vsel %vm176, %v84, 0
  %v187 = vsel %vm176, %v85, 0
  %189 = vmatpush.msra.mxu0 0.0
  %190 = vmatpush.msra.mxu0 0.0
  %191 = vmatpush.msra.mxu0 0.0
  %192 = vmatpush.msra.mxu0 0.0
  %193 = vmatpush.msra.mxu0 0.0
  %194 = vmatpush.msra.mxu0 0.0
  %195 = vmatpush.msra.mxu0 0.0
  %196 = vmatpush.msra.mxu0 0.0
  %197 = vmatpush.msra.mxu0 0.0
  %198 = vmatpush.msra.mxu0 0.0
  %199 = vmatpush.msra.mxu0 0.0
  %200 = vmatpush.msra.mxu0 0.0
  %201 = vmatpush.msra.mxu0 0.0
  %202 = vmatpush.msra.mxu0 0.0
  %203 = vmatpush.msra.mxu0 0.0
  %204 = vmatpush.msra.mxu0 %v175
  %205 = vmatmul.f32.gmra.mxu0 %v178
  %v206 = vpop.f32.mrf.mxu0
  %v207 = vadd.f32 0.0, %v206
  %208 = vmatmul.f32.gmra.mxu0 %v181
  %v209 = vpop.f32.mrf.mxu0
  %v210 = vadd.f32 0.0, %v209
  %211 = vmatmul.f32.gmra.mxu0 %v184
  %v212 = vpop.f32.mrf.mxu0
  %v213 = vadd.f32 0.0, %v212
  %214 = vmatmul.f32.gmra.mxu0 %v187
  %v215 = vpop.f32.mrf.mxu0
  %v216 = vadd.f32 0.0, %v215
  %217 = vdwg.mxu0
  %v219 = vsel %vm176, %v152, 0
  %v222 = vsel %vm176, %v153, 0
  %v225 = vsel %vm176, %v154, 0
  %v228 = vsel %vm176, %v155, 0
  %230 = vmatpush.msra.mxu0 0.0
  %231 = vmatpush.msra.mxu0 0.0
  %232 = vmatpush.msra.mxu0 0.0
  %233 = vmatpush.msra.mxu0 0.0
  %234 = vmatpush.msra.mxu0 0.0
  %235 = vmatpush.msra.mxu0 0.0
  %236 = vmatpush.msra.mxu0 0.0
  %237 = vmatpush.msra.mxu0 0.0
  %238 = vmatpush.msra.mxu0 0.0
  %239 = vmatpush.msra.mxu0 0.0
  %240 = vmatpush.msra.mxu0 0.0
  %241 = vmatpush.msra.mxu0 0.0
  %242 = vmatpush.msra.mxu0 0.0
  %243 = vmatpush.msra.mxu0 0.0
  %244 = vmatpush.msra.mxu0 0.0
  %245 = vmatpush.msra.mxu0 %v173
  %246 = vmatmul.f32.gmra.mxu0 %v219
  %v247 = vpop.f32.mrf.mxu0
  %v248 = vadd.f32 %v207, %v247
  %249 = vmatmul.f32.gmra.mxu0 %v222
  %v250 = vpop.f32.mrf.mxu0
  %v251 = vadd.f32 %v210, %v250
  %252 = vmatmul.f32.gmra.mxu0 %v225
  %v253 = vpop.f32.mrf.mxu0
  %v254 = vadd.f32 %v213, %v253
  %255 = vmatmul.f32.gmra.mxu0 %v228
  %v256 = vpop.f32.mrf.mxu0
  %v257 = vadd.f32 %v216, %v256
  %258 = vdwg.mxu0
  %s259 = scalar_lea.vmem %s3, 16
  %v260 = vld [vmem:[%s259] sm:$0xff]
  %v262 = vsel %vm176, %v169, 0
  %v265 = vsel %vm176, %v170, 0
  %v268 = vsel %vm176, %v171, 0
  %v271 = vsel %vm176, %v172, 0
  %273 = vmatpush.msra.mxu0 0.0
  %274 = vmatpush.msra.mxu0 0.0
  %275 = vmatpush.msra.mxu0 0.0
  %276 = vmatpush.msra.mxu0 0.0
  %277 = vmatpush.msra.mxu0 0.0
  %278 = vmatpush.msra.mxu0 0.0
  %279 = vmatpush.msra.mxu0 0.0
  %280 = vmatpush.msra.mxu0 0.0
  %281 = vmatpush.msra.mxu0 0.0
  %282 = vmatpush.msra.mxu0 0.0
  %283 = vmatpush.msra.mxu0 0.0
  %284 = vmatpush.msra.mxu0 0.0
  %285 = vmatpush.msra.mxu0 0.0
  %286 = vmatpush.msra.mxu0 0.0
  %287 = vmatpush.msra.mxu0 0.0
  %288 = vmatpush.msra.mxu0 %v260
  %289 = vmatmul.f32.gmra.mxu0 %v262
  %v290 = vpop.f32.mrf.mxu0
  %v291 = vadd.f32 0.0, %v290
  %292 = vmatmul.f32.gmra.mxu0 %v265
  %v293 = vpop.f32.mrf.mxu0
  %v294 = vadd.f32 0.0, %v293
  %295 = vmatmul.f32.gmra.mxu0 %v268
  %v296 = vpop.f32.mrf.mxu0
  %v297 = vadd.f32 0.0, %v296
  %298 = vmatmul.f32.gmra.mxu0 %v271
  %v299 = vpop.f32.mrf.mxu0
  %v300 = vadd.f32 0.0, %v299
  %301 = vdwg.mxu0
  %v302 = vadd.f32 %v248, %v291
  %v303 = vadd.f32 %v251, %v294
  %v304 = vadd.f32 %v254, %v297
  %v305 = vadd.f32 %v257, %v300
  %v306 = vld [vmem:[%s4] sm:$0x1]
  %v308 = vperm.slane %v306, 0
  %v310 = vadd.f32 %v302, %v308
  %v311 = vadd.f32 %v303, %v308
  %v312 = vadd.f32 %v304, %v308
  %v313 = vadd.f32 %v305, %v308
  %v314 = vld [vmem:[%s5] sm:$0xff]
  %v315 = vld [vmem:[%s5 + $0x8] sm:$0xf]
  %v316 = vld [vmem:[%s6] sm:$0x1]
  %v318 = vperm.slane %v316, 0
  %v321 = vsel %vm49, %v315, 0
  %323 = vmatpush.msra.mxu0 0.0
  %324 = vmatpush.msra.mxu0 0.0
  %325 = vmatpush.msra.mxu0 0.0
  %326 = vmatpush.msra.mxu0 0.0
  %327 = vmatpush.msra.mxu0 0.0
  %328 = vmatpush.msra.mxu0 0.0
  %329 = vmatpush.msra.mxu0 0.0
  %330 = vmatpush.msra.mxu0 0.0
  %331 = vmatpush.msra.mxu0 0.0
  %332 = vmatpush.msra.mxu0 0.0
  %333 = vmatpush.msra.mxu0 0.0
  %334 = vmatpush.msra.mxu0 0.0
  %335 = vmatpush.msra.mxu0 0.0
  %336 = vmatpush.msra.mxu0 0.0
  %337 = vmatpush.msra.mxu0 %v321
  %338 = vmatpush.msra.mxu0 %v314
  %339 = vmatmul.f32.gmra.mxu0 %v38
  %v340 = vpop.f32.mrf.mxu0
  %v341 = vadd.f32 %v318, %v340
  %342 = vmatmul.f32.gmra.mxu0 %v41
  %v343 = vpop.f32.mrf.mxu0
  %v344 = vadd.f32 %v318, %v343
  %345 = vmatmul.f32.gmra.mxu0 %v44
  %v346 = vpop.f32.mrf.mxu0
  %v347 = vadd.f32 %v318, %v346
  %348 = vmatmul.f32.gmra.mxu0 %v47
  %v349 = vpop.f32.mrf.mxu0
  %v350 = vadd.f32 %v318, %v349
  %351 = vdwg.mxu0
  %v352 = vadd.f32 %v310, %v341
  %v353 = vadd.f32 %v311, %v344
  %v354 = vadd.f32 %v312, %v347
  %v355 = vadd.f32 %v313, %v350
  %356 = vst.msk [vmem:[%s7] sm:$0xff] %vm176, %v352
  %357 = vst.msk [vmem:[%s7 + $0x8] sm:$0xff] %vm176, %v353
  %358 = vst.msk [vmem:[%s7 + $0x10] sm:$0xff] %vm176, %v354
  %359 = vst.msk [vmem:[%s7 + $0x18] sm:$0xff] %vm176, %v355
  // Predicated region
  $region30: #{tpu_custom_call.1} parent=0 // pred_check
    _
  $region31: #{tpu_custom_call.1} parent=0 // pred_check_branch
    %361 = sbr.rel (0) target = $region33
  $region32: #{tpu_custom_call.1} parent=0 // pred_region
    _
  $region33: #{tpu_custom_call.1} parent=0 // pred_fallthru
    _
  // Predicated region
  $region34: #{tpu_custom_call.1} parent=0 // pred_check
    _
  $region35: #{tpu_custom_call.1} parent=0 // pred_check_branch
    %363 = sbr.rel (0) target = $region37
  $region36: #{tpu_custom_call.1} parent=0 // pred_region
    _
  $region37: #{tpu_custom_call.1} parent=0 // pred_fallthru
    _

</llo_original>
